<compile_context>
chip_gen: v6e
topology: v6e:2x2x1
jax: 0.10.0
libtpu: 0.0.40
codegen_flags: <defaults>
</compile_context>

<pallas_src>
import functools

import jax
import jax.numpy as jnp
from jax import lax
from jax.experimental import pallas as pl
from jax.experimental.pallas import tpu as pltpu


def _dice_partial_kernel(x_ref, y_ref, inter_ref, m1_ref, m2_ref, *,
                         rows, fold, num_blocks, full_rows, last_lanes,
                         needs_mask):
    """Accumulate per-sample sum(p*y), sum(p), sum(y) for one (N, rows, 128) tile."""
    s = pl.program_id(0)
    k = pl.program_id(1)
    k_steps = pl.num_programs(1)

    @pl.when(k == 0)
    def _init():
        inter_ref[...] = jnp.zeros_like(inter_ref)
        m1_ref[...] = jnp.zeros_like(m1_ref)
        m2_ref[...] = jnp.zeros_like(m2_ref)

    # Cast in-VMEM: inputs may be bf16 / int8 / bool in HBM (0/1 labels exact in f32).
    x = x_ref[...].astype(jnp.float32)              # (N, rows, 128)
    y = y_ref[...].astype(jnp.float32)
    # EUP-friendly sigmoid: one tanh push + two VALU ops (no f32 divide on v5e).
    p = 0.5 * (jnp.tanh(0.5 * x) + 1.0)

    groups = rows // fold                            # static

    def accumulate(pv, yv):
        nb = pv.shape[0]
        # Splitting the sublane axis (rows = groups*fold, both multiples of 8 or
        # the full extent) is layout-preserving; the sums over the non-minor
        # `groups` axis are plain vreg adds (no XLU).
        pv = pv.reshape(nb, groups, fold, 128)
        yv = yv.reshape(nb, groups, fold, 128)
        inter_ref[...] += jnp.sum(pv * yv, axis=1)[None]
        m1_ref[...] += jnp.sum(pv, axis=1)[None]
        m2_ref[...] += jnp.sum(yv, axis=1)[None]

    if needs_mask:
        blk = s * k_steps + k                        # un-clamped logical block id

        @pl.when(blk < num_blocks - 1)
        def _bulk():
            accumulate(p, y)

        @pl.when(blk >= num_blocks - 1)
        def _tail():
            # Row-granular mask plus a boundary-lane check: never forms a full
            # element index (no int32 overflow for multi-billion-element
            # volumes) and also nullifies phantom steps (blk >= num_blocks),
            # OOB rows of a partial block, and zero-padded lanes.
            row = lax.broadcasted_iota(jnp.int32, p.shape, 1) + blk * rows
            lane = lax.broadcasted_iota(jnp.int32, p.shape, 2)
            valid = (row < full_rows) | ((row == full_rows) & (lane < last_lanes))
            # NOTE: must remain a select (jnp.where), NOT multiply-by-mask:
            # out-of-bounds rows hold unread garbage (possibly NaN/Inf).
            accumulate(jnp.where(valid, p, 0.0), jnp.where(valid, y, 0.0))
    else:
        accumulate(p, y)


def soft_dice_loss(logits, labels, *, block_bytes_per_input=4 << 20):
    """Pallas implementation of SoftDiceLoss.forward(logits, labels).

    loss = 1 - (1/N) * sum_i 2*(sum(p_i*y_i)+1) / (sum(p_i)+sum(y_i)+1),
    p = sigmoid(logits), everything flattened per sample.
    """
    n = logits.shape[0]
    x = logits.reshape(n, -1)
    y = labels.reshape(n, -1)                        # native dtypes, no upcast copy
    d = x.shape[1]

    x_item = x.dtype.itemsize
    y_item = y.dtype.itemsize

    # Lane-dense 3D view (N, ceil(D/128), 128): a free metadata reshape in the
    # common D % 128 == 0 case.
    # TODO(synk): when D % 128 != 0 this pad costs one extra HBM pass of both
    # inputs; pad at the producer (or peel the <128-lane tail) to avoid it.
    if d % 128 != 0:
        pad = 128 - d % 128
        x = jnp.pad(x, ((0, 0), (0, pad)))
        y = jnp.pad(y, ((0, 0), (0, pad)))
    dr = x.shape[1] // 128                           # 128-lane rows per sample
    x3 = x.reshape(n, dr, 128)
    y3 = y.reshape(n, dr, 128)

    # Sublane granularity of the packed input dtypes (f32:8, bf16:16, int8/bool:32).
    r_gran = 8 * (4 // max(1, min(x_item, y_item, 4)))

    # Rows per grid step (see header): dtype-aware DMA target, VMEM cap, and a
    # min-steps cap with a per-step floor so 0.35us/step overhead never dominates.
    elems_target = max(1, block_bytes_per_input // x_item)
    elems_cap = (36 << 20) // (2 * (x_item + y_item) + 14)   # dbl-buf inputs + ~3.5 f32 temps
    elems = min(elems_target, elems_cap)
    r_target = max(r_gran, (elems // (n * 128)) // r_gran * r_gran)
    step_floor_bytes = min(block_bytes_per_input, 512 << 10)
    r_min = max(r_gran, (step_floor_bytes // (n * 128 * x_item)) // r_gran * r_gran)
    r_steps = max(r_min, (dr // 8) // r_gran * r_gran)       # aim for >= ~8 blocks
    if dr <= r_gran:
        r = dr                                               # full extent: always legal
    else:
        r = min(r_target, r_steps)
        r = min(r, (dr // r_gran) * r_gran)                  # never exceed the array
    num_blocks = pl.cdiv(dr, r)

    # Always split ceil-wise into 2 shards when possible so a dual-TensorCore
    # chip (v7x) can run both halves of this bandwidth-bound sweep concurrently;
    # odd block counts get one phantom (clamped + masked) step instead of
    # collapsing to a single core.
    # TODO(synk): switch the shard axis to pltpu.CORE_PARALLEL once >=2 TCs can
    # be assumed; "parallel" is the portable choice across v5e/v6e/v7x.
    shards = 2 if num_blocks >= 2 else 1
    k_steps = pl.cdiv(num_blocks, shards)

    fold = 8 if r % 8 == 0 else r                    # f32 accumulator sublane depth
    needs_mask = (shards * k_steps * r * 128 != d)   # partial/phantom block or lane tail

    kernel = functools.partial(
        _dice_partial_kernel, rows=r, fold=fold, num_blocks=num_blocks,
        full_rows=d // 128, last_lanes=d % 128, needs_mask=needs_mask)

    def in_index_map(s, k):
        # Clamp so phantom steps re-read the last real block instead of walking
        # off the array; the in-kernel mask zeroes their contribution.
        return (0, jnp.minimum(s * k_steps + k, num_blocks - 1), 0)

    partial_shape = jax.ShapeDtypeStruct((shards, n, fold, 128), jnp.float32)
    in_block = pl.BlockSpec((n, r, 128), in_index_map)
    out_block = pl.BlockSpec((1, n, fold, 128), lambda s, k: (s, 0, 0, 0))

    inter_p, m1_p, m2_p = pl.pallas_call(
        kernel,
        out_shape=(partial_shape, partial_shape, partial_shape),
        grid_spec=pltpu.PrefetchScalarGridSpec(
            num_scalar_prefetch=0,
            grid=(shards, k_steps),
            in_specs=[in_block, in_block],
            out_specs=(out_block, out_block, out_block),
        ),
        compiler_params=pltpu.CompilerParams(
            dimension_semantics=("parallel", "arbitrary"),
            vmem_limit_bytes=40 << 20),              # headroom on v7x's 64 MiB/TC
    )(x3, y3)

    # Tiny JAX epilogue on the (shards, N, fold, 128) partial sums.
    inter = jnp.sum(inter_p, axis=(0, 2, 3))
    m1 = jnp.sum(m1_p, axis=(0, 2, 3))
    m2 = jnp.sum(m2_p, axis=(0, 2, 3))
    score = 2.0 * (inter + 1.0) / (m1 + m2 + 1.0)
    return 1.0 - jnp.sum(score) / n


def _reference(logits, labels):
    n = logits.shape[0]
    p = jax.nn.sigmoid(logits.astype(jnp.float32)).reshape(n, -1)
    y = labels.reshape(n, -1).astype(jnp.float32)
    inter = jnp.sum(p * y, axis=1)
    score = 2.0 * (inter + 1.0) / (jnp.sum(p, axis=1) + jnp.sum(y, axis=1) + 1.0)
    return 1.0 - jnp.sum(score) / n


if __name__ == "__main__":
    key = jax.random.PRNGKey(0)
    cases = [
        # (NCHW shape, logits dtype, labels dtype, block_bytes_per_input override)
        ((2, 4, 16, 16), jnp.float32, jnp.float32, None),     # canonical small case
        ((2, 8, 32, 32), jnp.bfloat16, jnp.int8, 16 << 10),   # narrow dtypes, 2-shard path
        ((2, 2, 33, 33), jnp.float32, jnp.float32, 8 << 10),  # lane tail + odd blocks (phantom)
    ]
    for shape, xdt, ydt, bb in cases:
        key, kx, ky = jax.random.split(key, 3)
        logits = jax.random.normal(kx, shape, dtype=jnp.float32).astype(xdt)
        labels = (jax.random.uniform(ky, shape) > 0.5).astype(ydt)
        kwargs = {} if bb is None else {"block_bytes_per_input": bb}
        loss = jax.block_until_ready(soft_dice_loss(logits, labels, **kwargs))
        ref = jax.block_until_ready(_reference(logits, labels))
        assert jnp.allclose(loss, ref, atol=5e-5, rtol=5e-5), (shape, loss, ref)
    print("KERNEL_OK")
</pallas_src>

<mosaic_0001>
module attributes {stable_mosaic.version = 11 : i64} {
  func.func @_dice_partial_kernel(%arg0: i32, %arg1: i32, %arg2: memref<2x8x128xf32, #tpu.memory_space<vmem>>, %arg3: memref<2x8x128xf32, #tpu.memory_space<vmem>>, %arg4: memref<1x2x8x128xf32, #tpu.memory_space<vmem>>, %arg5: memref<1x2x8x128xf32, #tpu.memory_space<vmem>>, %arg6: memref<1x2x8x128xf32, #tpu.memory_space<vmem>>) attributes {dimension_semantics = [#tpu.dimension_semantics<parallel>, #tpu.dimension_semantics<arbitrary>], iteration_bounds = array<i64: 1, 1>, scalar_prefetch = 0 : i64, scratch_operands = 0 : i64, tpu.core_type = #tpu.core_type<tc>, window_params = [{transform_indices = @transform_0, window_bounds = array<i64: 2, 8, 128>}, {transform_indices = @transform_1, window_bounds = array<i64: 2, 8, 128>}, {transform_indices = @transform_2, window_bounds = array<i64: 1, 2, 8, 128>}, {transform_indices = @transform_3, window_bounds = array<i64: 1, 2, 8, 128>}, {transform_indices = @transform_4, window_bounds = array<i64: 1, 2, 8, 128>}]} {
    %c0_i32 = arith.constant 0 : i32
    %0 = arith.cmpi eq, %arg1, %c0_i32 : i32
    %1 = arith.extui %0 : i1 to i32
    %c0_i32_0 = arith.constant 0 : i32
    %2 = arith.cmpi ne, %1, %c0_i32_0 : i32
    scf.if %2 {
      %cst_35 = arith.constant 0.000000e+00 : f32
      %30 = vector.broadcast %cst_35 : f32 to vector<1x2x8x128xf32>
      %c0_36 = arith.constant 0 : index
      %c0_37 = arith.constant 0 : index
      %c0_38 = arith.constant 0 : index
      %c0_39 = arith.constant 0 : index
      %31 = vector.load %arg4[%c0_36, %c0_37, %c0_38, %c0_39] : memref<1x2x8x128xf32, #tpu.memory_space<vmem>>, vector<1x2x8x128xf32>
      tpu.vector_store %arg4[%c0_36, %c0_37, %c0_38, %c0_39], %30 {strides = array<i32>} : memref<1x2x8x128xf32, #tpu.memory_space<vmem>>, vector<1x2x8x128xf32>,
      %cst_40 = arith.constant 0.000000e+00 : f32
      %32 = vector.broadcast %cst_40 : f32 to vector<1x2x8x128xf32>
      %c0_41 = arith.constant 0 : index
      %c0_42 = arith.constant 0 : index
      %c0_43 = arith.constant 0 : index
      %c0_44 = arith.constant 0 : index
      %33 = vector.load %arg5[%c0_41, %c0_42, %c0_43, %c0_44] : memref<1x2x8x128xf32, #tpu.memory_space<vmem>>, vector<1x2x8x128xf32>
      tpu.vector_store %arg5[%c0_41, %c0_42, %c0_43, %c0_44], %32 {strides = array<i32>} : memref<1x2x8x128xf32, #tpu.memory_space<vmem>>, vector<1x2x8x128xf32>,
      %cst_45 = arith.constant 0.000000e+00 : f32
      %34 = vector.broadcast %cst_45 : f32 to vector<1x2x8x128xf32>
      %c0_46 = arith.constant 0 : index
      %c0_47 = arith.constant 0 : index
      %c0_48 = arith.constant 0 : index
      %c0_49 = arith.constant 0 : index
      %35 = vector.load %arg6[%c0_46, %c0_47, %c0_48, %c0_49] : memref<1x2x8x128xf32, #tpu.memory_space<vmem>>, vector<1x2x8x128xf32>
      tpu.vector_store %arg6[%c0_46, %c0_47, %c0_48, %c0_49], %34 {strides = array<i32>} : memref<1x2x8x128xf32, #tpu.memory_space<vmem>>, vector<1x2x8x128xf32>,
    } else {
    }
    %c0 = arith.constant 0 : index
    %c0_1 = arith.constant 0 : index
    %c0_2 = arith.constant 0 : index
    %3 = vector.load %arg2[%c0, %c0_1, %c0_2] : memref<2x8x128xf32, #tpu.memory_space<vmem>>, vector<2x8x128xf32>
    %c0_3 = arith.constant 0 : index
    %c0_4 = arith.constant 0 : index
    %c0_5 = arith.constant 0 : index
    %4 = vector.load %arg3[%c0_3, %c0_4, %c0_5] : memref<2x8x128xf32, #tpu.memory_space<vmem>>, vector<2x8x128xf32>
    %cst = arith.constant 5.000000e-01 : f32
    %5 = vector.broadcast %cst : f32 to vector<2x8x128xf32>
    %6 = arith.mulf %5, %3 : vector<2x8x128xf32>
    %7 = math.tanh %6 : vector<2x8x128xf32>
    %cst_6 = arith.constant 1.000000e+00 : f32
    %8 = vector.broadcast %cst_6 : f32 to vector<2x8x128xf32>
    %9 = arith.addf %7, %8 : vector<2x8x128xf32>
    %cst_7 = arith.constant 5.000000e-01 : f32
    %10 = vector.broadcast %cst_7 : f32 to vector<2x8x128xf32>
    %11 = arith.mulf %10, %9 : vector<2x8x128xf32>
    %12 = vector.shape_cast %11 : vector<2x8x128xf32> to vector<2x1x8x128xf32>
    %13 = vector.shape_cast %4 : vector<2x8x128xf32> to vector<2x1x8x128xf32>
    %c0_8 = arith.constant 0 : index
    %c0_9 = arith.constant 0 : index
    %c0_10 = arith.constant 0 : index
    %c0_11 = arith.constant 0 : index
    %14 = vector.load %arg4[%c0_8, %c0_9, %c0_10, %c0_11] : memref<1x2x8x128xf32, #tpu.memory_space<vmem>>, vector<1x2x8x128xf32>
    %15 = arith.mulf %12, %13 : vector<2x1x8x128xf32>
    %cst_12 = arith.constant dense<0.000000e+00> : vector<2x8x128xf32>
    %16 = vector.multi_reduction <add>, %15, %cst_12 [1] : vector<2x1x8x128xf32> to vector<2x8x128xf32>
    %17 = vector.shape_cast %16 : vector<2x8x128xf32> to vector<1x2x8x128xf32>
    %18 = arith.addf %14, %17 : vector<1x2x8x128xf32>
    %c0_13 = arith.constant 0 : index
    %c0_14 = arith.constant 0 : index
    %c0_15 = arith.constant 0 : index
    %c0_16 = arith.constant 0 : index
    %19 = vector.load %arg4[%c0_13, %c0_14, %c0_15, %c0_16] : memref<1x2x8x128xf32, #tpu.memory_space<vmem>>, vector<1x2x8x128xf32>
    tpu.vector_store %arg4[%c0_13, %c0_14, %c0_15, %c0_16], %18 {strides = array<i32>} : memref<1x2x8x128xf32, #tpu.memory_space<vmem>>, vector<1x2x8x128xf32>,
    %c0_17 = arith.constant 0 : index
    %c0_18 = arith.constant 0 : index
    %c0_19 = arith.constant 0 : index
    %c0_20 = arith.constant 0 : index
    %20 = vector.load %arg5[%c0_17, %c0_18, %c0_19, %c0_20] : memref<1x2x8x128xf32, #tpu.memory_space<vmem>>, vector<1x2x8x128xf32>
    %cst_21 = arith.constant dense<0.000000e+00> : vector<2x8x128xf32>
    %21 = vector.multi_reduction <add>, %12, %cst_21 [1] : vector<2x1x8x128xf32> to vector<2x8x128xf32>
    %22 = vector.shape_cast %21 : vector<2x8x128xf32> to vector<1x2x8x128xf32>
    %23 = arith.addf %20, %22 : vector<1x2x8x128xf32>
    %c0_22 = arith.constant 0 : index
    %c0_23 = arith.constant 0 : index
    %c0_24 = arith.constant 0 : index
    %c0_25 = arith.constant 0 : index
    %24 = vector.load %arg5[%c0_22, %c0_23, %c0_24, %c0_25] : memref<1x2x8x128xf32, #tpu.memory_space<vmem>>, vector<1x2x8x128xf32>
    tpu.vector_store %arg5[%c0_22, %c0_23, %c0_24, %c0_25], %23 {strides = array<i32>} : memref<1x2x8x128xf32, #tpu.memory_space<vmem>>, vector<1x2x8x128xf32>,
    %c0_26 = arith.constant 0 : index
    %c0_27 = arith.constant 0 : index
    %c0_28 = arith.constant 0 : index
    %c0_29 = arith.constant 0 : index
    %25 = vector.load %arg6[%c0_26, %c0_27, %c0_28, %c0_29] : memref<1x2x8x128xf32, #tpu.memory_space<vmem>>, vector<1x2x8x128xf32>
    %cst_30 = arith.constant dense<0.000000e+00> : vector<2x8x128xf32>
    %26 = vector.multi_reduction <add>, %13, %cst_30 [1] : vector<2x1x8x128xf32> to vector<2x8x128xf32>
    %27 = vector.shape_cast %26 : vector<2x8x128xf32> to vector<1x2x8x128xf32>
    %28 = arith.addf %25, %27 : vector<1x2x8x128xf32>
    %c0_31 = arith.constant 0 : index
    %c0_32 = arith.constant 0 : index
    %c0_33 = arith.constant 0 : index
    %c0_34 = arith.constant 0 : index
    %29 = vector.load %arg6[%c0_31, %c0_32, %c0_33, %c0_34] : memref<1x2x8x128xf32, #tpu.memory_space<vmem>>, vector<1x2x8x128xf32>
    tpu.vector_store %arg6[%c0_31, %c0_32, %c0_33, %c0_34], %28 {strides = array<i32>} : memref<1x2x8x128xf32, #tpu.memory_space<vmem>>, vector<1x2x8x128xf32>,
    return
  }
  func.func @transform_0(%arg0: i32, %arg1: i32) -> (i32, i32, i32) {
    %c1_i32 = arith.constant 1 : i32
    %0 = arith.muli %arg0, %c1_i32 : i32
    %1 = arith.addi %0, %arg1 : i32
    %c0_i32 = arith.constant 0 : i32
    %2 = arith.minsi %1, %c0_i32 : i32
    %c0_i32_0 = arith.constant 0 : i32
    %c0_i32_1 = arith.constant 0 : i32
    %c0_i32_2 = arith.constant 0 : i32
    return %c0_i32_0, %2, %c0_i32_1 : i32, i32, i32
  }
  func.func @transform_1(%arg0: i32, %arg1: i32) -> (i32, i32, i32) {
    %c1_i32 = arith.constant 1 : i32
    %0 = arith.muli %arg0, %c1_i32 : i32
    %1 = arith.addi %0, %arg1 : i32
    %c0_i32 = arith.constant 0 : i32
    %2 = arith.minsi %1, %c0_i32 : i32
    %c0_i32_0 = arith.constant 0 : i32
    %c0_i32_1 = arith.constant 0 : i32
    %c0_i32_2 = arith.constant 0 : i32
    return %c0_i32_0, %2, %c0_i32_1 : i32, i32, i32
  }
  func.func @transform_2(%arg0: i32, %arg1: i32) -> (i32, i32, i32, i32) {
    %c0_i32 = arith.constant 0 : i32
    %c0_i32_0 = arith.constant 0 : i32
    %c0_i32_1 = arith.constant 0 : i32
    %c0_i32_2 = arith.constant 0 : i32
    return %arg0, %c0_i32, %c0_i32_0, %c0_i32_1 : i32, i32, i32, i32
  }
  func.func @transform_3(%arg0: i32, %arg1: i32) -> (i32, i32, i32, i32) {
    %c0_i32 = arith.constant 0 : i32
    %c0_i32_0 = arith.constant 0 : i32
    %c0_i32_1 = arith.constant 0 : i32
    %c0_i32_2 = arith.constant 0 : i32
    return %arg0, %c0_i32, %c0_i32_0, %c0_i32_1 : i32, i32, i32, i32
  }
  func.func @transform_4(%arg0: i32, %arg1: i32) -> (i32, i32, i32, i32) {
    %c0_i32 = arith.constant 0 : i32
    %c0_i32_0 = arith.constant 0 : i32
    %c0_i32_1 = arith.constant 0 : i32
    %c0_i32_2 = arith.constant 0 : i32
    return %arg0, %c0_i32, %c0_i32_0, %c0_i32_1 : i32, i32, i32, i32
  }
}

</mosaic_0001>

<llo_original>
// kernel: tpu_custom_call.1
$region0: #{tpu_custom_call.1}
  #allocation0 [shape = 'u32[]', space=smem, size = 0x4, offset = 0x4, fixed_abs, tag = 'smem constant byte address 0x4 - core index']
  #allocation1 [shape = 'u32[144,128]{1,0:T(1,128)}', space=vmem, size = 0x12000, scoped, tag = 'internal scratch']
  %s0 = inlined_call_operand.hbm [shape: f32[2,8,128], index: 0, kind: input, shape index: {}]
  %s1 = inlined_call_operand.hbm [shape: f32[2,8,128], index: 1, kind: input, shape index: {}]
  %s2 = inlined_call_operand.hbm [shape: f32[1,2,8,128], index: 2, kind: output, shape index: {0}]
  %s3 = inlined_call_operand.hbm [shape: f32[1,2,8,128], index: 3, kind: output, shape index: {1}]
  %s4 = inlined_call_operand.hbm [shape: f32[1,2,8,128], index: 4, kind: output, shape index: {2}]
  %5 = xla_tuple %s2, %s3, %s4
  %s6 = sld [smem:[#allocation0]]
  $region46: #{tpu_custom_call.1} parent=0
    _
  %s8 = ssub.s32 1, %s6
  %s9 = scalar_select 0, %s8, %s6
  $region1: #{tpu_custom_call.1} parent=0
    #allocation2 [shape = 'u8[8192]{0}', space=vmem, size = 0x2000, scoped, tag = 'input window, operand 0, single buffered']
    #allocation3 [shape = 's32[1]{0}', space=sflag, size = 0x4, scoped, tag = 'scoped memory for tpu_custom_call.1']
    #allocation4 [shape = 's32[1]{0}', space=sflag, size = 0x4, scoped, tag = 'scoped memory for tpu_custom_call.1']
    #allocation5 [shape = 'u8[8192]{0}', space=vmem, size = 0x2000, scoped, tag = 'input window, operand 1, single buffered']
    #allocation6 [shape = 's32[1]{0}', space=sflag, size = 0x4, scoped, tag = 'scoped memory for tpu_custom_call.1']
    #allocation7 [shape = 'u8[8192]{0}', space=vmem, size = 0x2000, scoped, tag = 'output window, operand 0, single buffered']
    #allocation8 [shape = 'u8[8192]{0}', space=vmem, size = 0x2000, scoped, tag = 'output window, operand 1, single buffered']
    #allocation9 [shape = 's32[1]{0}', space=sflag, size = 0x4, scoped, tag = 'scoped memory for tpu_custom_call.1']
    #allocation10 [shape = 'u8[8192]{0}', space=vmem, size = 0x2000, scoped, tag = 'output window, operand 2, single buffered']
    %10 = vsyncpa [#allocation3], 0
    %11 = vsyncpa [#allocation6], 0
    %12 = vsyncpa [#allocation4], 0
    %13 = vsyncpa [#allocation9], 0
    // Predicated region
    $region2: #{tpu_custom_call.1} parent=1 // pred_check
      _
    $region3: #{tpu_custom_call.1} parent=1 // pred_check_branch
      %15 = sbr.rel (0) target = $region5
    $region4: #{tpu_custom_call.1} parent=1 // pred_region
      %s16 = sadd.s32 0, 0
      %p17 = scmp.lt.s32.totalorder %s16, 0
      %s18 = scalar_select %p17, %s16, 0
      %s20 = ssub.s32 256, 256
      %21 = vsyncadd [#allocation3], %s20
      %s22 = smul.addr %s18, 128
      %s23 = scalar_lea.hbm %s0, %s22
      %s24 = sshll.u32 [#allocation2], 4
      %s25 = int_to_ptr.vmem [resolvable:$true] %s24
      %30 = dma.hbm_to_vmem [thread:$0]  %s23, 256, %s25, [#allocation3], 128, 128, 8
    $region5: #{tpu_custom_call.1} parent=1 // pred_fallthru
      _
    // Predicated region
    $region6: #{tpu_custom_call.1} parent=1 // pred_check
      _
    $region7: #{tpu_custom_call.1} parent=1 // pred_check_branch
      %32 = sbr.rel (0) target = $region9
    $region8: #{tpu_custom_call.1} parent=1 // pred_region
      %s33 = sadd.s32 0, 0
      %p34 = scmp.lt.s32.totalorder %s33, 0
      %s35 = scalar_select %p34, %s33, 0
      %s37 = ssub.s32 256, 256
      %38 = vsyncadd [#allocation6], %s37
      %s39 = smul.addr %s35, 128
      %s40 = scalar_lea.hbm %s1, %s39
      %s41 = sshll.u32 [#allocation5], 4
      %s42 = int_to_ptr.vmem [resolvable:$true] %s41
      %47 = dma.hbm_to_vmem [thread:$0]  %s40, 256, %s42, [#allocation6], 128, 128, 8
    $region9: #{tpu_custom_call.1} parent=1 // pred_fallthru
      _
    // Predicated region
    $region10: #{tpu_custom_call.1} parent=1 // pred_check
      _
    $region11: #{tpu_custom_call.1} parent=1 // pred_check_branch
      %49 = sbr.rel (0) target = $region13
    $region12: #{tpu_custom_call.1} parent=1 // pred_region
      %50 = dma.done [#allocation3], 256
    $region13: #{tpu_custom_call.1} parent=1 // pred_fallthru
      _
    // Predicated region
    $region14: #{tpu_custom_call.1} parent=1 // pred_check
      _
    $region15: #{tpu_custom_call.1} parent=1 // pred_check_branch
      %52 = sbr.rel (0) target = $region17
    $region16: #{tpu_custom_call.1} parent=1 // pred_region
      %53 = dma.done [#allocation6], 256
    $region17: #{tpu_custom_call.1} parent=1 // pred_fallthru
      _
    %s54 = sadd.s32 0, 0
    %p55 = scmp.lt.s32.totalorder %s54, 0
    %s56 = scalar_select %p55, %s54, 0
    %s57 = sadd.s32 0, 0
    %p58 = scmp.lt.s32.totalorder %s57, 0
    %s59 = scalar_select %p58, %s57, 0
    %p60 = scmp.eq.s32.totalorder 0, 0
    // Predicated region
    $region18: #{tpu_custom_call.1} parent=1 // pred_check
      %p61 = pneg %p60
    $region19: #{tpu_custom_call.1} parent=1 // pred_check_branch
      %63 = sbr.rel (%p61) target = $region21
    $region20: #{tpu_custom_call.1} parent=1 // pred_region
      %64 = vst [vmem:[#allocation7] sm:$0xff] 0.0
      %65 = vst [vmem:[#allocation7 + $0x8] sm:$0xff] 0.0
      %66 = vst [vmem:[#allocation8] sm:$0xff] 0.0
      %67 = vst [vmem:[#allocation8 + $0x8] sm:$0xff] 0.0
      %68 = vst [vmem:[#allocation10] sm:$0xff] 0.0
      %69 = vst [vmem:[#allocation10 + $0x8] sm:$0xff] 0.0
    $region21: #{tpu_custom_call.1} parent=1 // pred_fallthru
      _
    %v70 = vld [vmem:[#allocation2] sm:$0xff]
    %v71 = vld [vmem:[#allocation2 + $0x8] sm:$0xff]
    %v72 = vld [vmem:[#allocation5] sm:$0xff]
    %v73 = vld [vmem:[#allocation5 + $0x8] sm:$0xff]
    %v74 = vmul.f32 %v70, 0.5
    %v75 = vmul.f32 %v71, 0.5
    %v76 = vtanh.pop %v74
    %v77 = vtanh.pop %v75
    %v78 = vadd.f32 %v76, 1.0
    %v79 = vadd.f32 %v77, 1.0
    %v80 = vmul.f32 %v78, 0.5
    %v81 = vmul.f32 %v79, 0.5
    %v82 = vld [vmem:[#allocation7] sm:$0xff]
    %v83 = vld [vmem:[#allocation7 + $0x8] sm:$0xff]
    %v84 = vmul.f32 %v80, %v72
    %v85 = vmul.f32 %v81, %v73
    %v86 = vadd.f32 %v84, 0.0
    %v87 = vadd.f32 %v85, 0.0
    %v88 = vadd.f32 %v82, %v86
    %v89 = vadd.f32 %v83, %v87
    %90 = vst [vmem:[#allocation7] sm:$0xff] %v88
    %91 = vst [vmem:[#allocation7 + $0x8] sm:$0xff] %v89
    %v92 = vld [vmem:[#allocation8] sm:$0xff]
    %v93 = vld [vmem:[#allocation8 + $0x8] sm:$0xff]
    %v94 = vadd.f32 %v80, 0.0
    %v95 = vadd.f32 %v81, 0.0
    %v96 = vadd.f32 %v92, %v94
    %v97 = vadd.f32 %v93, %v95
    %98 = vst [vmem:[#allocation8] sm:$0xff] %v96
    %99 = vst [vmem:[#allocation8 + $0x8] sm:$0xff] %v97
    %v100 = vld [vmem:[#allocation10] sm:$0xff]
    %v101 = vld [vmem:[#allocation10 + $0x8] sm:$0xff]
    %v102 = vadd.f32 %v72, 0.0
    %v103 = vadd.f32 %v73, 0.0
    %v104 = vadd.f32 %v100, %v102
    %v105 = vadd.f32 %v101, %v103
    %106 = vst [vmem:[#allocation10] sm:$0xff] %v104
    %107 = vst [vmem:[#allocation10 + $0x8] sm:$0xff] %v105
    // Predicated region
    $region22: #{tpu_custom_call.1} parent=1 // pred_check
      _
    $region23: #{tpu_custom_call.1} parent=1 // pred_check_branch
      %109 = sbr.rel (0) target = $region25
    $region24: #{tpu_custom_call.1} parent=1 // pred_region
      %s111 = ssub.s32 256, 256
      %112 = vsyncadd [#allocation4], %s111
      %s113 = sshll.u32 [#allocation7], 4
      %s114 = int_to_ptr.vmem [resolvable:$true] %s113
      %119 = dma.vmem_to_hbm [thread:$0]  %s114, 256, %s2, [#allocation4], 128, 128, 8
    $region25: #{tpu_custom_call.1} parent=1 // pred_fallthru
      _
    // Predicated region
    $region26: #{tpu_custom_call.1} parent=1 // pred_check
      _
    $region27: #{tpu_custom_call.1} parent=1 // pred_check_branch
      %121 = sbr.rel (0) target = $region29
    $region28: #{tpu_custom_call.1} parent=1 // pred_region
      %s123 = ssub.s32 256, 256
      %124 = vsyncadd [#allocation9], %s123
      %s125 = sshll.u32 [#allocation8], 4
      %s126 = int_to_ptr.vmem [resolvable:$true] %s125
      %131 = dma.vmem_to_hbm [thread:$0]  %s126, 256, %s3, [#allocation9], 128, 128, 8
    $region29: #{tpu_custom_call.1} parent=1 // pred_fallthru
      _
    // Predicated region
    $region30: #{tpu_custom_call.1} parent=1 // pred_check
      _
    $region31: #{tpu_custom_call.1} parent=1 // pred_check_branch
      %133 = sbr.rel (0) target = $region33
    $region32: #{tpu_custom_call.1} parent=1 // pred_region
      %s135 = ssub.s32 256, 256
      %136 = vsyncadd [#allocation9], %s135
      %s137 = sshll.u32 [#allocation10], 4
      %s138 = int_to_ptr.vmem [resolvable:$true] %s137
      %143 = dma.vmem_to_hbm [thread:$0]  %s138, 256, %s4, [#allocation9], 128, 128, 8
    $region33: #{tpu_custom_call.1} parent=1 // pred_fallthru
      _
    // Predicated region
    $region34: #{tpu_custom_call.1} parent=1 // pred_check
      _
    $region35: #{tpu_custom_call.1} parent=1 // pred_check_branch
      %145 = sbr.rel (0) target = $region37
    $region36: #{tpu_custom_call.1} parent=1 // pred_region
      %146 = dma.done [#allocation4], 256
    $region37: #{tpu_custom_call.1} parent=1 // pred_fallthru
      _
    // Predicated region
    $region38: #{tpu_custom_call.1} parent=1 // pred_check
      _
    $region39: #{tpu_custom_call.1} parent=1 // pred_check_branch
      %148 = sbr.rel (0) target = $region41
    $region40: #{tpu_custom_call.1} parent=1 // pred_region
      %149 = dma.done [#allocation9], 256
    $region41: #{tpu_custom_call.1} parent=1 // pred_fallthru
      _
    // Predicated region
    $region42: #{tpu_custom_call.1} parent=1 // pred_check
      _
    $region43: #{tpu_custom_call.1} parent=1 // pred_check_branch
      %151 = sbr.rel (0) target = $region45
    $region44: #{tpu_custom_call.1} parent=1 // pred_region
      %152 = dma.done [#allocation9], 256
    $region45: #{tpu_custom_call.1} parent=1 // pred_fallthru
      _
    %153 = vsyncpa [#allocation3], 1
    %154 = vsyncpa [#allocation6], 1
    %155 = vsyncpa [#allocation4], 1
    %156 = vsyncpa [#allocation9], 1

</llo_original>
